<compile_context>
chip_gen: v7x
topology: tpu7x:2x2x1
jax: 0.10.0
libtpu: 0.0.40
codegen_flags: <defaults>
</compile_context>

<pallas_src>
import functools

import jax
import jax.numpy as jnp
from jax.experimental import pallas as pl
from jax.experimental.pallas import tpu as pltpu


# ---------------------------------------------------------------------------
# Layer-size arithmetic (replicates LinearReluEncoder.__init__)
# ---------------------------------------------------------------------------
def _encoder_dims(input_dim: int, latent_dim: int):
    transition_step = (input_dim - latent_dim) // 4
    remainder = (input_dim - latent_dim) % 4
    start = input_dim - (transition_step + remainder)
    n_f = lambda i: start - transition_step * i
    return [
        (input_dim, n_f(0)),   # lin_in  (bias, relu)
        (n_f(0), n_f(1)),      # lin_one (bias, relu)
        (n_f(1), n_f(2)),      # lin_two (bias, relu)
        (n_f(2), latent_dim),  # lin_out (no bias, no relu)
    ]


def _round_up(n: int, m: int) -> int:
    return ((n + m - 1) // m) * m


def _cdiv(a: int, b: int) -> int:
    return -(-a // b)


# ---------------------------------------------------------------------------
# Kernel: one batch tile through all four layers, entirely in VMEM.
# Weights may be bf16; activations are cast to the weight dtype before each
# MXU matmul, accumulation is always f32 (preferred_element_type).
# ---------------------------------------------------------------------------
def _mlp_kernel(x_ref, w0_ref, b0_ref, w1_ref, b1_ref, w2_ref, b2_ref, w3_ref,
                o_ref):
    wdt = w0_ref.dtype
    h = jnp.dot(x_ref[...].astype(wdt), w0_ref[...],
                preferred_element_type=jnp.float32)
    h = jnp.maximum(h + b0_ref[...], 0.0)

    h = jnp.dot(h.astype(wdt), w1_ref[...], preferred_element_type=jnp.float32)
    h = jnp.maximum(h + b1_ref[...], 0.0)

    h = jnp.dot(h.astype(wdt), w2_ref[...], preferred_element_type=jnp.float32)
    h = jnp.maximum(h + b2_ref[...], 0.0)

    z = jnp.dot(h.astype(wdt), w3_ref[...], preferred_element_type=jnp.float32)
    o_ref[...] = z.astype(o_ref.dtype)


# ---------------------------------------------------------------------------
# Generation-aware VMEM cap and batch-tile selection
# ---------------------------------------------------------------------------
def _vmem_cap_bytes() -> int:
    phys = 64 << 20  # conservative default (v7x per-TC VMEM)
    try:
        info = pltpu.get_tpu_info()
        phys = int(getattr(info, "vmem_capacity_bytes", phys))
    except Exception:
        pass
    # Leave headroom for Mosaic internal scratch / DMA semaphores:
    # 128 MiB (v5e/v6e) -> 112 MiB, 64 MiB (v7x) -> 48 MiB.
    return max(phys - (16 << 20), 16 << 20)


def _choose_tile_b(batch: int, d_in: int, widths_pad, param_bytes: int,
                   vmem_cap: int) -> int:
    d_lat_pad = widths_pad[-1]
    # Per batch-row VMEM: double-buffered streamed x/out tiles + f32
    # intermediates (upper bound: 3 live buffers of the widest hidden layer).
    per_row = 4 * (2 * d_in + 2 * d_lat_pad) + 4 * 3 * max(widths_pad)
    budget = max(vmem_cap - param_bytes - (4 << 20), 1 << 20)
    tile = min(2048, budget // per_row)
    if batch > 8:
        # >= 2 grid steps so ("parallel",) can use both TensorCores on v7x.
        tile = min(tile, _cdiv(batch, 2))
    tile = min(tile, batch)
    return max(8, _round_up(int(tile), 8))


# ---------------------------------------------------------------------------
# Wrapper
# ---------------------------------------------------------------------------
@functools.partial(jax.jit, static_argnames=("latent_dim", "tile_b"))
def linear_relu_encoder(x, params, latent_dim: int, tile_b: int | None = None):
    """x: (B, input_dim) float32. params from init_params (lane dims padded)."""
    B, d_in = x.shape
    d_lat_pad = params["w3"].shape[1]
    widths_pad = [params[f"w{i}"].shape[1] for i in range(4)]

    ordered = (params["w0"], params["b0"], params["w1"], params["b1"],
               params["w2"], params["b2"], params["w3"])
    param_bytes = sum(int(a.size) * jnp.dtype(a.dtype).itemsize for a in ordered)

    vmem_cap = _vmem_cap_bytes()
    if tile_b is None:
        tile_b = _choose_tile_b(B, d_in, widths_pad, param_bytes, vmem_cap)
    tile_b = max(8, _round_up(int(tile_b), 8))

    grid = (_cdiv(B, tile_b),)

    # Weights/biases: constant index_map, single-buffered (resident in VMEM).
    def const_spec(a):
        return pl.BlockSpec(a.shape, lambda i: (0,) * a.ndim,
                            pipeline_mode=pl.Buffered(1))

    in_specs = [pl.BlockSpec((tile_b, d_in), lambda i: (i, 0))]
    in_specs += [const_spec(a) for a in ordered]
    out_spec = pl.BlockSpec((tile_b, d_lat_pad), lambda i: (i, 0))

    # VMEM budget: single-buffered params + double-buffered streamed tiles
    # + f32 intermediates.
    x_tile_bytes = 4 * tile_b * d_in
    out_tile_bytes = 4 * tile_b * d_lat_pad
    inter_bytes = 3 * 4 * tile_b * max(widths_pad)
    resident = param_bytes + 2 * (x_tile_bytes + out_tile_bytes) + inter_bytes
    vmem_limit = int(min(vmem_cap, max(resident + (4 << 20), 16 << 20)))

    flops = 2 * B * sum(int(w.shape[0]) * int(w.shape[1])
                        for w in (ordered[0], ordered[2], ordered[4], ordered[6]))
    bytes_accessed = int(x.size) * 4 + param_bytes + B * d_lat_pad * 4

    out_p = pl.pallas_call(
        _mlp_kernel,
        out_shape=jax.ShapeDtypeStruct((B, d_lat_pad), x.dtype),
        grid=grid,
        in_specs=in_specs,
        out_specs=out_spec,
        compiler_params=pltpu.CompilerParams(
            dimension_semantics=("parallel",),
            vmem_limit_bytes=vmem_limit,
        ),
        cost_estimate=pl.CostEstimate(
            flops=flops, transcendentals=0, bytes_accessed=bytes_accessed),
    )(x, *ordered)

    return out_p[:, :latent_dim]


# ---------------------------------------------------------------------------
# Params (PyTorch nn.Linear-style init).  Lane (N) dims padded to 128; layer-0
# K is kept at the real input_dim (no wrapper-side padding of x needed).
# Zero padding is exact: padded columns/biases are zero, ReLU(0)=0 and the
# matching padded K rows of the next layer are zero.
# ---------------------------------------------------------------------------
def init_params(key, input_dim: int, latent_dim: int, dtype=jnp.bfloat16):
    dims = _encoder_dims(input_dim, latent_dim)
    keys = jax.random.split(key, 8)
    params = {}
    for i, (d_in, d_out) in enumerate(dims):
        d_in_p = d_in if i == 0 else _round_up(d_in, 128)
        d_out_p = _round_up(d_out, 128)
        scale = 1.0 / (float(d_in) ** 0.5)
        w = jax.random.uniform(keys[2 * i], (d_in, d_out), jnp.float32,
                               -scale, scale)
        params[f"w{i}"] = (jnp.zeros((d_in_p, d_out_p), dtype)
                           .at[:d_in, :d_out].set(w.astype(dtype)))
        if i < 3:  # lin_out has bias=False
            b = jax.random.uniform(keys[2 * i + 1], (1, d_out), jnp.float32,
                                   -scale, scale)
            params[f"b{i}"] = (jnp.zeros((1, d_out_p), jnp.float32)
                               .at[:, :d_out].set(b))
    return params


# ---------------------------------------------------------------------------
# Pure-JAX reference (same weight dtype / cast sequence as the kernel)
# ---------------------------------------------------------------------------
def reference(x, params, latent_dim: int):
    wdt = params["w0"].dtype

    def lin(h, w, b=None):
        z = jnp.dot(h.astype(wdt), w, preferred_element_type=jnp.float32)
        if b is not None:
            z = z + b.astype(jnp.float32)
        return z

    h = jnp.maximum(lin(x, params["w0"], params["b0"]), 0.0)
    h = jnp.maximum(lin(h, params["w1"], params["b1"]), 0.0)
    h = jnp.maximum(lin(h, params["w2"], params["b2"]), 0.0)
    z = lin(h, params["w3"])
    return z[:, :latent_dim]


if __name__ == "__main__":
    input_dim, latent_dim = 32, 8

    key = jax.random.PRNGKey(0)
    k_x, k_p, k_x2 = jax.random.split(key, 3)

    # Default: bf16 weights, f32 accumulation.
    params = init_params(k_p, input_dim, latent_dim)

    # Case 1: small batch, single grid step.
    x = jax.random.normal(k_x, (8, input_dim), jnp.float32)
    z = jax.block_until_ready(linear_relu_encoder(x, params, latent_dim))
    z_ref = reference(x, params, latent_dim)
    assert z.shape == (8, latent_dim), z.shape
    assert jnp.allclose(z, z_ref, atol=2e-2, rtol=2e-2), "mismatch (batch=8)"

    # Case 2: ragged batch, multi-step pipelined grid (partial last tile,
    # no HBM padding copy of x).
    x2 = jax.random.normal(k_x2, (40, input_dim), jnp.float32)
    z2 = jax.block_until_ready(
        linear_relu_encoder(x2, params, latent_dim, tile_b=16))
    z2_ref = reference(x2, params, latent_dim)
    assert z2.shape == (40, latent_dim), z2.shape
    assert jnp.allclose(z2, z2_ref, atol=2e-2, rtol=2e-2), "mismatch (batch=40)"

    # Case 3: f32 weights — exact match vs reference, auto tile (>=2 steps).
    params_f32 = init_params(k_p, input_dim, latent_dim, dtype=jnp.float32)
    z3 = jax.block_until_ready(linear_relu_encoder(x2, params_f32, latent_dim))
    z3_ref = reference(x2, params_f32, latent_dim)
    assert jnp.allclose(z3, z3_ref, atol=1e-5, rtol=1e-5), "mismatch (f32)"

    print("KERNEL_OK")
</pallas_src>

<mosaic_0001>
module attributes {stable_mosaic.version = 11 : i64} {
  func.func @_mlp_kernel(%arg0: i32, %arg1: memref<8x32xf32, #tpu.memory_space<vmem>>, %arg2: memref<32x128xbf16, #tpu.memory_space<vmem>>, %arg3: memref<1x128xf32, #tpu.memory_space<vmem>>, %arg4: memref<128x128xbf16, #tpu.memory_space<vmem>>, %arg5: memref<1x128xf32, #tpu.memory_space<vmem>>, %arg6: memref<128x128xbf16, #tpu.memory_space<vmem>>, %arg7: memref<1x128xf32, #tpu.memory_space<vmem>>, %arg8: memref<128x128xbf16, #tpu.memory_space<vmem>>, %arg9: memref<8x128xf32, #tpu.memory_space<vmem>>) attributes {dimension_semantics = [#tpu.dimension_semantics<parallel>], iteration_bounds = array<i64: 1>, scalar_prefetch = 0 : i64, scratch_operands = 0 : i64, tpu.core_type = #tpu.core_type<tc>, window_params = [{transform_indices = @transform_0, window_bounds = array<i64: 8, 32>}, {pipeline_mode = #tpu.pipeline_mode<synchronous>, transform_indices = @transform_1, window_bounds = array<i64: 32, 128>}, {pipeline_mode = #tpu.pipeline_mode<synchronous>, transform_indices = @transform_2, window_bounds = array<i64: 1, 128>}, {pipeline_mode = #tpu.pipeline_mode<synchronous>, transform_indices = @transform_3, window_bounds = array<i64: 128, 128>}, {pipeline_mode = #tpu.pipeline_mode<synchronous>, transform_indices = @transform_4, window_bounds = array<i64: 1, 128>}, {pipeline_mode = #tpu.pipeline_mode<synchronous>, transform_indices = @transform_5, window_bounds = array<i64: 128, 128>}, {pipeline_mode = #tpu.pipeline_mode<synchronous>, transform_indices = @transform_6, window_bounds = array<i64: 1, 128>}, {pipeline_mode = #tpu.pipeline_mode<synchronous>, transform_indices = @transform_7, window_bounds = array<i64: 128, 128>}, {transform_indices = @transform_8, window_bounds = array<i64: 8, 128>}]} {
    %c0 = arith.constant 0 : index
    %c0_0 = arith.constant 0 : index
    %0 = vector.load %arg1[%c0, %c0_0] : memref<8x32xf32, #tpu.memory_space<vmem>>, vector<8x32xf32>
    %1 = arith.truncf %0 : vector<8x32xf32> to vector<8x32xbf16>
    %c0_1 = arith.constant 0 : index
    %c0_2 = arith.constant 0 : index
    %2 = vector.load %arg2[%c0_1, %c0_2] : memref<32x128xbf16, #tpu.memory_space<vmem>>, vector<32x128xbf16>
    %cst = arith.constant dense<0.000000e+00> : vector<8x128xf32>
    %3 = tpu.matmul %1, %2, %cst {dimension_numbers = #tpu.dot_dimension_numbers<[1], [0], [0], [1], [0, 0, 1, 1], [], []>} : vector<8x32xbf16>, vector<32x128xbf16>, vector<8x128xf32> -> vector<8x128xf32>
    %c0_3 = arith.constant 0 : index
    %c0_4 = arith.constant 0 : index
    %4 = vector.load %arg3[%c0_3, %c0_4] : memref<1x128xf32, #tpu.memory_space<vmem>>, vector<1x128xf32>
    %5 = vector.broadcast %4 : vector<1x128xf32> to vector<8x128xf32>
    %6 = arith.addf %3, %5 : vector<8x128xf32>
    %cst_5 = arith.constant 0.000000e+00 : f32
    %7 = vector.broadcast %cst_5 : f32 to vector<8x128xf32>
    %8 = arith.maximumf %6, %7 : vector<8x128xf32>
    %9 = arith.truncf %8 : vector<8x128xf32> to vector<8x128xbf16>
    %c0_6 = arith.constant 0 : index
    %c0_7 = arith.constant 0 : index
    %10 = vector.load %arg4[%c0_6, %c0_7] : memref<128x128xbf16, #tpu.memory_space<vmem>>, vector<128x128xbf16>
    %cst_8 = arith.constant dense<0.000000e+00> : vector<8x128xf32>
    %11 = tpu.matmul %9, %10, %cst_8 {dimension_numbers = #tpu.dot_dimension_numbers<[1], [0], [0], [1], [0, 0, 1, 1], [], []>} : vector<8x128xbf16>, vector<128x128xbf16>, vector<8x128xf32> -> vector<8x128xf32>
    %c0_9 = arith.constant 0 : index
    %c0_10 = arith.constant 0 : index
    %12 = vector.load %arg5[%c0_9, %c0_10] : memref<1x128xf32, #tpu.memory_space<vmem>>, vector<1x128xf32>
    %13 = vector.broadcast %12 : vector<1x128xf32> to vector<8x128xf32>
    %14 = arith.addf %11, %13 : vector<8x128xf32>
    %cst_11 = arith.constant 0.000000e+00 : f32
    %15 = vector.broadcast %cst_11 : f32 to vector<8x128xf32>
    %16 = arith.maximumf %14, %15 : vector<8x128xf32>
    %17 = arith.truncf %16 : vector<8x128xf32> to vector<8x128xbf16>
    %c0_12 = arith.constant 0 : index
    %c0_13 = arith.constant 0 : index
    %18 = vector.load %arg6[%c0_12, %c0_13] : memref<128x128xbf16, #tpu.memory_space<vmem>>, vector<128x128xbf16>
    %cst_14 = arith.constant dense<0.000000e+00> : vector<8x128xf32>
    %19 = tpu.matmul %17, %18, %cst_14 {dimension_numbers = #tpu.dot_dimension_numbers<[1], [0], [0], [1], [0, 0, 1, 1], [], []>} : vector<8x128xbf16>, vector<128x128xbf16>, vector<8x128xf32> -> vector<8x128xf32>
    %c0_15 = arith.constant 0 : index
    %c0_16 = arith.constant 0 : index
    %20 = vector.load %arg7[%c0_15, %c0_16] : memref<1x128xf32, #tpu.memory_space<vmem>>, vector<1x128xf32>
    %21 = vector.broadcast %20 : vector<1x128xf32> to vector<8x128xf32>
    %22 = arith.addf %19, %21 : vector<8x128xf32>
    %cst_17 = arith.constant 0.000000e+00 : f32
    %23 = vector.broadcast %cst_17 : f32 to vector<8x128xf32>
    %24 = arith.maximumf %22, %23 : vector<8x128xf32>
    %25 = arith.truncf %24 : vector<8x128xf32> to vector<8x128xbf16>
    %c0_18 = arith.constant 0 : index
    %c0_19 = arith.constant 0 : index
    %26 = vector.load %arg8[%c0_18, %c0_19] : memref<128x128xbf16, #tpu.memory_space<vmem>>, vector<128x128xbf16>
    %cst_20 = arith.constant dense<0.000000e+00> : vector<8x128xf32>
    %27 = tpu.matmul %25, %26, %cst_20 {dimension_numbers = #tpu.dot_dimension_numbers<[1], [0], [0], [1], [0, 0, 1, 1], [], []>} : vector<8x128xbf16>, vector<128x128xbf16>, vector<8x128xf32> -> vector<8x128xf32>
    %c0_21 = arith.constant 0 : index
    %c0_22 = arith.constant 0 : index
    %28 = vector.load %arg9[%c0_21, %c0_22] : memref<8x128xf32, #tpu.memory_space<vmem>>, vector<8x128xf32>
    tpu.vector_store %arg9[%c0_21, %c0_22], %27 {strides = array<i32>} : memref<8x128xf32, #tpu.memory_space<vmem>>, vector<8x128xf32>,
    return
  }
  func.func @transform_0(%arg0: i32) -> (i32, i32) {
    %c0_i32 = arith.constant 0 : i32
    %c0_i32_0 = arith.constant 0 : i32
    return %arg0, %c0_i32 : i32, i32
  }
  func.func @transform_1(%arg0: i32) -> (i32, i32) {
    %c0_i32 = arith.constant 0 : i32
    %c0_i32_0 = arith.constant 0 : i32
    %c0_i32_1 = arith.constant 0 : i32
    return %c0_i32, %c0_i32_0 : i32, i32
  }
  func.func @transform_2(%arg0: i32) -> (i32, i32) {
    %c0_i32 = arith.constant 0 : i32
    %c0_i32_0 = arith.constant 0 : i32
    %c0_i32_1 = arith.constant 0 : i32
    return %c0_i32, %c0_i32_0 : i32, i32
  }
  func.func @transform_3(%arg0: i32) -> (i32, i32) {
    %c0_i32 = arith.constant 0 : i32
    %c0_i32_0 = arith.constant 0 : i32
    %c0_i32_1 = arith.constant 0 : i32
    return %c0_i32, %c0_i32_0 : i32, i32
  }
  func.func @transform_4(%arg0: i32) -> (i32, i32) {
    %c0_i32 = arith.constant 0 : i32
    %c0_i32_0 = arith.constant 0 : i32
    %c0_i32_1 = arith.constant 0 : i32
    return %c0_i32, %c0_i32_0 : i32, i32
  }
  func.func @transform_5(%arg0: i32) -> (i32, i32) {
    %c0_i32 = arith.constant 0 : i32
    %c0_i32_0 = arith.constant 0 : i32
    %c0_i32_1 = arith.constant 0 : i32
    return %c0_i32, %c0_i32_0 : i32, i32
  }
  func.func @transform_6(%arg0: i32) -> (i32, i32) {
    %c0_i32 = arith.constant 0 : i32
    %c0_i32_0 = arith.constant 0 : i32
    %c0_i32_1 = arith.constant 0 : i32
    return %c0_i32, %c0_i32_0 : i32, i32
  }
  func.func @transform_7(%arg0: i32) -> (i32, i32) {
    %c0_i32 = arith.constant 0 : i32
    %c0_i32_0 = arith.constant 0 : i32
    %c0_i32_1 = arith.constant 0 : i32
    return %c0_i32, %c0_i32_0 : i32, i32
  }
  func.func @transform_8(%arg0: i32) -> (i32, i32) {
    %c0_i32 = arith.constant 0 : i32
    %c0_i32_0 = arith.constant 0 : i32
    return %arg0, %c0_i32 : i32, i32
  }
}

</mosaic_0001>

<llo_original>
// kernel: linear_relu_encoder.1
$region0: #{linear_relu_encoder.1}
  #allocation0 [shape = 'u32[]', space=smem, size = 0x4, offset = 0x4, fixed_abs, tag = 'smem constant byte address 0x4 - core index']
  #allocation1 [shape = 'u32[144,128]{1,0:T(1,128)}', space=vmem, size = 0x12000, scoped, tag = 'internal scratch']
  %s0 = inlined_call_operand.hbm [shape: f32[8,32], index: 0, kind: input, shape index: {}]
  %s1 = inlined_call_operand.hbm [shape: bf16[32,128], index: 1, kind: input, shape index: {}]
  %s2 = inlined_call_operand.vmem [shape: f32[1,128], index: 2, kind: input, shape index: {}]
  %s3 = inlined_call_operand.hbm [shape: bf16[128,128], index: 3, kind: input, shape index: {}]
  %s4 = inlined_call_operand.vmem [shape: f32[1,128], index: 4, kind: input, shape index: {}]
  %s5 = inlined_call_operand.hbm [shape: bf16[128,128], index: 5, kind: input, shape index: {}]
  %s6 = inlined_call_operand.vmem [shape: f32[1,128], index: 6, kind: input, shape index: {}]
  %s7 = inlined_call_operand.hbm [shape: bf16[128,128], index: 7, kind: input, shape index: {}]
  %s8 = inlined_call_operand.hbm [shape: f32[8,128], index: 8, kind: output, shape index: {}]
  %s9 = sld [smem:[#allocation0]]
  $region62: #{linear_relu_encoder.1} parent=0
    _
  %s11 = ssub.s32 1, %s9
  %s12 = scalar_select 0, %s11, %s9
  $region1: #{linear_relu_encoder.1} parent=0
    #allocation2 [shape = 'u8[4096]{0}', space=vmem, size = 0x1000, scoped, tag = 'input window, operand 0, single buffered']
    #allocation3 [shape = 's32[1]{0}', space=sflag, size = 0x4, scoped, tag = 'scoped memory for linear_relu_encoder.1']
    #allocation4 [shape = 's32[1]{0}', space=sflag, size = 0x4, scoped, tag = 'scoped memory for linear_relu_encoder.1']
    #allocation5 [shape = 'u8[8192]{0}', space=vmem, size = 0x2000, scoped, tag = 'input window, operand 1, single buffered']
    #allocation6 [shape = 's32[1]{0}', space=sflag, size = 0x4, scoped, tag = 'scoped memory for linear_relu_encoder.1']
    #allocation7 [shape = 'u8[32768]{0}', space=vmem, size = 0x8000, scoped, tag = 'input window, operand 3, single buffered']
    #allocation8 [shape = 'u8[32768]{0}', space=vmem, size = 0x8000, scoped, tag = 'input window, operand 5, single buffered']
    #allocation9 [shape = 's32[1]{0}', space=sflag, size = 0x4, scoped, tag = 'scoped memory for linear_relu_encoder.1']
    #allocation10 [shape = 'u8[32768]{0}', space=vmem, size = 0x8000, scoped, tag = 'input window, operand 7, single buffered']
    #allocation11 [shape = 'u8[4096]{0}', space=vmem, size = 0x1000, scoped, tag = 'output window, operand 0, single buffered']
    %13 = vsyncpa [#allocation3], 0
    %14 = vsyncpa [#allocation6], 0
    %15 = vsyncpa [#allocation9], 0
    %16 = vsyncpa [#allocation4], 0
    // Predicated region
    $region2: #{linear_relu_encoder.1} parent=1 // pred_check
      _
    $region3: #{linear_relu_encoder.1} parent=1 // pred_check_branch
      %18 = sbr.rel (0) target = $region5
    $region4: #{linear_relu_encoder.1} parent=1 // pred_region
      %s20 = ssub.s32 128, 128
      %21 = vsyncadd [#allocation3], %s20
      %s23 = sshll.u32 [#allocation2], 4
      %s24 = int_to_ptr.vmem [resolvable:$true] %s23
      %26 = dma.hbm_to_vmem [thread:$0]  %s0, 128, %s24, [#allocation3]
    $region5: #{linear_relu_encoder.1} parent=1 // pred_fallthru
      _
    // Predicated region
    $region6: #{linear_relu_encoder.1} parent=1 // pred_check
      _
    $region7: #{linear_relu_encoder.1} parent=1 // pred_check_branch
      %28 = sbr.rel (0) target = $region9
    $region8: #{linear_relu_encoder.1} parent=1 // pred_region
      %s30 = ssub.s32 256, 256
      %31 = vsyncadd [#allocation6], %s30
      %s32 = sshll.u32 [#allocation5], 4
      %s33 = int_to_ptr.vmem [resolvable:$true] %s32
      %38 = dma.hbm_to_vmem [thread:$0]  %s1, 256, %s33, [#allocation6], 64, 64, 4
    $region9: #{linear_relu_encoder.1} parent=1 // pred_fallthru
      _
    // Predicated region
    $region10: #{linear_relu_encoder.1} parent=1 // pred_check
      _
    $region11: #{linear_relu_encoder.1} parent=1 // pred_check_branch
      %40 = sbr.rel (0) target = $region13
    $region12: #{linear_relu_encoder.1} parent=1 // pred_region
      _
    $region13: #{linear_relu_encoder.1} parent=1 // pred_fallthru
      _
    // Predicated region
    $region14: #{linear_relu_encoder.1} parent=1 // pred_check
      _
    $region15: #{linear_relu_encoder.1} parent=1 // pred_check_branch
      %42 = sbr.rel (0) target = $region17
    $region16: #{linear_relu_encoder.1} parent=1 // pred_region
      %s44 = ssub.s32 1024, 1024
      %45 = vsyncadd [#allocation6], %s44
      %s46 = sshll.u32 [#allocation7], 4
      %s47 = int_to_ptr.vmem [resolvable:$true] %s46
      %52 = dma.hbm_to_vmem [thread:$0]  %s3, 1024, %s47, [#allocation6], 64, 64, 4
    $region17: #{linear_relu_encoder.1} parent=1 // pred_fallthru
      _
    // Predicated region
    $region18: #{linear_relu_encoder.1} parent=1 // pred_check
      _
    $region19: #{linear_relu_encoder.1} parent=1 // pred_check_branch
      %54 = sbr.rel (0) target = $region21
    $region20: #{linear_relu_encoder.1} parent=1 // pred_region
      _
    $region21: #{linear_relu_encoder.1} parent=1 // pred_fallthru
      _
    // Predicated region
    $region22: #{linear_relu_encoder.1} parent=1 // pred_check
      _
    $region23: #{linear_relu_encoder.1} parent=1 // pred_check_branch
      %56 = sbr.rel (0) target = $region25
    $region24: #{linear_relu_encoder.1} parent=1 // pred_region
      %s58 = ssub.s32 1024, 1024
      %59 = vsyncadd [#allocation9], %s58
      %s60 = sshll.u32 [#allocation8], 4
      %s61 = int_to_ptr.vmem [resolvable:$true] %s60
      %66 = dma.hbm_to_vmem [thread:$0]  %s5, 1024, %s61, [#allocation9], 64, 64, 4
    $region25: #{linear_relu_encoder.1} parent=1 // pred_fallthru
      _
    // Predicated region
    $region26: #{linear_relu_encoder.1} parent=1 // pred_check
      _
    $region27: #{linear_relu_encoder.1} parent=1 // pred_check_branch
      %68 = sbr.rel (0) target = $region29
    $region28: #{linear_relu_encoder.1} parent=1 // pred_region
      _
    $region29: #{linear_relu_encoder.1} parent=1 // pred_fallthru
      _
    // Predicated region
    $region30: #{linear_relu_encoder.1} parent=1 // pred_check
      _
    $region31: #{linear_relu_encoder.1} parent=1 // pred_check_branch
      %70 = sbr.rel (0) target = $region33
    $region32: #{linear_relu_encoder.1} parent=1 // pred_region
      %s72 = ssub.s32 1024, 1024
      %73 = vsyncadd [#allocation9], %s72
      %s74 = sshll.u32 [#allocation10], 4
      %s75 = int_to_ptr.vmem [resolvable:$true] %s74
      %80 = dma.hbm_to_vmem [thread:$0]  %s7, 1024, %s75, [#allocation9], 64, 64, 4
    $region33: #{linear_relu_encoder.1} parent=1 // pred_fallthru
      _
    // Predicated region
    $region34: #{linear_relu_encoder.1} parent=1 // pred_check
      _
    $region35: #{linear_relu_encoder.1} parent=1 // pred_check_branch
      %82 = sbr.rel (0) target = $region37
    $region36: #{linear_relu_encoder.1} parent=1 // pred_region
      %83 = dma.done [#allocation3], 128
    $region37: #{linear_relu_encoder.1} parent=1 // pred_fallthru
      _
    // Predicated region
    $region38: #{linear_relu_encoder.1} parent=1 // pred_check
      _
    $region39: #{linear_relu_encoder.1} parent=1 // pred_check_branch
      %85 = sbr.rel (0) target = $region41
    $region40: #{linear_relu_encoder.1} parent=1 // pred_region
      %86 = dma.done [#allocation6], 256
    $region41: #{linear_relu_encoder.1} parent=1 // pred_fallthru
      _
    // Predicated region
    $region42: #{linear_relu_encoder.1} parent=1 // pred_check
      _
    $region43: #{linear_relu_encoder.1} parent=1 // pred_check_branch
      %88 = sbr.rel (0) target = $region45
    $region44: #{linear_relu_encoder.1} parent=1 // pred_region
      %89 = dma.done [#allocation6], 1024
    $region45: #{linear_relu_encoder.1} parent=1 // pred_fallthru
      _
    // Predicated region
    $region46: #{linear_relu_encoder.1} parent=1 // pred_check
      _
    $region47: #{linear_relu_encoder.1} parent=1 // pred_check_branch
      %91 = sbr.rel (0) target = $region49
    $region48: #{linear_relu_encoder.1} parent=1 // pred_region
      %92 = dma.done [#allocation9], 1024
    $region49: #{linear_relu_encoder.1} parent=1 // pred_fallthru
      _
    // Predicated region
    $region50: #{linear_relu_encoder.1} parent=1 // pred_check
      _
    $region51: #{linear_relu_encoder.1} parent=1 // pred_check_branch
      %94 = sbr.rel (0) target = $region53
    $region52: #{linear_relu_encoder.1} parent=1 // pred_region
      %95 = dma.done [#allocation9], 1024
    $region53: #{linear_relu_encoder.1} parent=1 // pred_fallthru
      _
    %v97 = vld [vmem:[#allocation2] sm:$0xff]
    %v98 = vpack.c.bf16 %v97, %v97
    %v99 = vld [vmem:[#allocation5] sm:$0xf]
    %v100 = vld [vmem:[#allocation5 + $0x4] sm:$0xf]
    %v101 = vld [vmem:[#allocation5 + $0x8] sm:$0xf]
    %v102 = vld [vmem:[#allocation5 + $0xc] sm:$0xf]
    %v103 = vld [vmem:[%s2] sm:$0x1]
    %v105 = vlaneseq
    %v106 = vshrl.u32 %v105, 7
    %v107 = vsub.s32 0, %v106
    %v108 = vrot.slane %v103, %v107
    %v114 = vunpack.c.l.b16 %v99
    %v115 = vunpack.c.l.b16 %v100
    %v116 = vunpack.c.l.b16 %v101
    %v117 = vunpack.c.l.b16 %v102
    %v118 = vpack.c.b16 %v115, %v114
    %v119 = vpack.c.b16 %v117, %v116
    %vm122 = vcmask 261120
    %v124 = vsel %vm122, %v98, 0
    %126 = vmatprep.subr.bf16.mxu0 0
    %127 = vmatpush1.bf16.msra.mxu0 %v118
    %128 = vmatprep.subr.bf16.mxu0 0
    %129 = vmatpush1.bf16.msra.mxu0 %v119
    %130 = vmatprep.subr.bf16.mxu0 0
    %131 = vmatpush1.bf16.msra.mxu0 0
    %132 = vmatprep.subr.bf16.mxu0 0
    %133 = vmatpush1.bf16.msra.mxu0 0
    %134 = vmatprep.subr.bf16.mxu0 0
    %135 = vmatpush1.bf16.msra.mxu0 0
    %136 = vmatprep.subr.bf16.mxu0 0
    %137 = vmatpush1.bf16.msra.mxu0 0
    %138 = vmatprep.subr.bf16.mxu0 0
    %139 = vmatpush1.bf16.msra.mxu0 0
    %140 = vmatprep.subr.bf16.mxu0 0
    %141 = vmatpush1.bf16.msra.mxu0 0
    %142 = vmatprep.subr.bf16.mxu0 0
    %143 = vmatpush1.bf16.msra.mxu0 0
    %144 = vmatprep.subr.bf16.mxu0 0
    %145 = vmatpush1.bf16.msra.mxu0 0
    %146 = vmatprep.subr.bf16.mxu0 0
    %147 = vmatpush1.bf16.msra.mxu0 0
    %148 = vmatprep.subr.bf16.mxu0 0
    %149 = vmatpush1.bf16.msra.mxu0 0
    %150 = vmatprep.subr.bf16.mxu0 0
    %151 = vmatpush1.bf16.msra.mxu0 0
    %152 = vmatprep.subr.bf16.mxu0 0
    %153 = vmatpush1.bf16.msra.mxu0 0
    %154 = vmatprep.subr.bf16.mxu0 0
    %155 = vmatpush1.bf16.msra.mxu0 0
    %156 = vmatprep.subr.bf16.mxu0 0
    %157 = vmatpush1.bf16.msra.mxu0 0
    %158 = vmatprep.mubr.bf16.mxu0 0
    %159 = vmatmul.mubr.bf16.gmra.mrb[0].mxu0 %v124
    %v160 = vpop.f32.mrb[0].mxu0
    %v161 = vadd.f32 %v108, %v160
    %v162 = vpop.f32.mrb[0].mxu0
    %v163 = vpop.f32.mrb[0].mxu0
    %v164 = vpop.f32.mrb[0].mxu0
    %165 = vdwg.mxu0
    %v166 = vmax.f32 %v161, 0.0
    %v167 = vpack.c.bf16 %v166, %v166
    %v168 = vld [vmem:[#allocation7] sm:$0xf]
    %v169 = vld [vmem:[#allocation7 + $0x4] sm:$0xf]
    %v170 = vld [vmem:[#allocation7 + $0x8] sm:$0xf]
    %v171 = vld [vmem:[#allocation7 + $0xc] sm:$0xf]
    %v172 = vld [vmem:[#allocation7 + $0x10] sm:$0xf]
    %v173 = vld [vmem:[#allocation7 + $0x14] sm:$0xf]
    %v174 = vld [vmem:[#allocation7 + $0x18] sm:$0xf]
    %v175 = vld [vmem:[#allocation7 + $0x1c] sm:$0xf]
    %v176 = vld [vmem:[#allocation7 + $0x20] sm:$0xf]
    %v177 = vld [vmem:[#allocation7 + $0x24] sm:$0xf]
    %v178 = vld [vmem:[#allocation7 + $0x28] sm:$0xf]
    %v179 = vld [vmem:[#allocation7 + $0x2c] sm:$0xf]
    %v180 = vld [vmem:[#allocation7 + $0x30] sm:$0xf]
    %v181 = vld [vmem:[#allocation7 + $0x34] sm:$0xf]
    %v182 = vld [vmem:[#allocation7 + $0x38] sm:$0xf]
    %v183 = vld [vmem:[#allocation7 + $0x3c] sm:$0xf]
    %v184 = vld [vmem:[%s4] sm:$0x1]
    %v186 = vlaneseq
    %v187 = vshrl.u32 %v186, 7
    %v188 = vsub.s32 0, %v187
    %v189 = vrot.slane %v184, %v188
    %v207 = vunpack.c.l.b16 %v168
    %v208 = vunpack.c.l.b16 %v169
    %v209 = vunpack.c.l.b16 %v170
    %v210 = vunpack.c.l.b16 %v171
    %v211 = vunpack.c.l.b16 %v172
    %v212 = vunpack.c.l.b16 %v173
    %v213 = vunpack.c.l.b16 %v174
    %v214 = vunpack.c.l.b16 %v175
    %v215 = vunpack.c.l.b16 %v176
    %v216 = vunpack.c.l.b16 %v177
    %v217 = vunpack.c.l.b16 %v178
    %v218 = vunpack.c.l.b16 %v179
    %v219 = vunpack.c.l.b16 %v180
    %v220 = vunpack.c.l.b16 %v181
    %v221 = vunpack.c.l.b16 %v182
    %v222 = vunpack.c.l.b16 %v183
    %v223 = vpack.c.b16 %v208, %v207
    %v224 = vpack.c.b16 %v210, %v209
    %v225 = vpack.c.b16 %v212, %v211
    %v226 = vpack.c.b16 %v214, %v213
    %v227 = vpack.c.b16 %v216, %v215
    %v228 = vpack.c.b16 %v218, %v217
    %v229 = vpack.c.b16 %v220, %v219
    %v230 = vpack.c.b16 %v222, %v221
    %239 = vmatprep.subr.bf16.mxu0 0
    %240 = vmatpush1.bf16.msra.mxu0 %v223
    %241 = vmatprep.subr.bf16.mxu0 0
    %242 = vmatpush1.bf16.msra.mxu0 %v224
    %243 = vmatprep.subr.bf16.mxu0 0
    %244 = vmatpush1.bf16.msra.mxu0 %v225
    %245 = vmatprep.subr.bf16.mxu0 0
    %246 = vmatpush1.bf16.msra.mxu0 %v226
    %247 = vmatprep.subr.bf16.mxu0 0
    %248 = vmatpush1.bf16.msra.mxu0 %v227
    %249 = vmatprep.subr.bf16.mxu0 0
    %250 = vmatpush1.bf16.msra.mxu0 %v228
    %251 = vmatprep.subr.bf16.mxu0 0
    %252 = vmatpush1.bf16.msra.mxu0 %v229
    %253 = vmatprep.subr.bf16.mxu0 0
    %254 = vmatpush1.bf16.msra.mxu0 %v230
    %255 = vmatprep.subr.bf16.mxu0 0
    %256 = vmatpush1.bf16.msra.mxu0 0
    %257 = vmatprep.subr.bf16.mxu0 0
    %258 = vmatpush1.bf16.msra.mxu0 0
    %259 = vmatprep.subr.bf16.mxu0 0
    %260 = vmatpush1.bf16.msra.mxu0 0
    %261 = vmatprep.subr.bf16.mxu0 0
    %262 = vmatpush1.bf16.msra.mxu0 0
    %263 = vmatprep.subr.bf16.mxu0 0
    %264 = vmatpush1.bf16.msra.mxu0 0
    %265 = vmatprep.subr.bf16.mxu0 0
    %266 = vmatpush1.bf16.msra.mxu0 0
    %267 = vmatprep.subr.bf16.mxu0 0
    %268 = vmatpush1.bf16.msra.mxu0 0
    %269 = vmatprep.subr.bf16.mxu0 0
    %270 = vmatpush1.bf16.msra.mxu0 0
    %271 = vmatprep.mubr.bf16.mxu0 0
    %272 = vmatmul.mubr.bf16.gmra.mrb[0].mxu0 %v167
    %v273 = vpop.f32.mrb[0].mxu0
    %v274 = vadd.f32 %v189, %v273
    %v275 = vpop.f32.mrb[0].mxu0
    %v276 = vpop.f32.mrb[0].mxu0
    %v277 = vpop.f32.mrb[0].mxu0
    %278 = vdwg.mxu0
    %v279 = vmax.f32 %v274, 0.0
    %v280 = vpack.c.bf16 %v279, %v279
    %v281 = vld [vmem:[#allocation8] sm:$0xf]
    %v282 = vld [vmem:[#allocation8 + $0x4] sm:$0xf]
    %v283 = vld [vmem:[#allocation8 + $0x8] sm:$0xf]
    %v284 = vld [vmem:[#allocation8 + $0xc] sm:$0xf]
    %v285 = vld [vmem:[#allocation8 + $0x10] sm:$0xf]
    %v286 = vld [vmem:[#allocation8 + $0x14] sm:$0xf]
    %v287 = vld [vmem:[#allocation8 + $0x18] sm:$0xf]
    %v288 = vld [vmem:[#allocation8 + $0x1c] sm:$0xf]
    %v289 = vld [vmem:[#allocation8 + $0x20] sm:$0xf]
    %v290 = vld [vmem:[#allocation8 + $0x24] sm:$0xf]
    %v291 = vld [vmem:[#allocation8 + $0x28] sm:$0xf]
    %v292 = vld [vmem:[#allocation8 + $0x2c] sm:$0xf]
    %v293 = vld [vmem:[#allocation8 + $0x30] sm:$0xf]
    %v294 = vld [vmem:[#allocation8 + $0x34] sm:$0xf]
    %v295 = vld [vmem:[#allocation8 + $0x38] sm:$0xf]
    %v296 = vld [vmem:[#allocation8 + $0x3c] sm:$0xf]
    %v297 = vld [vmem:[%s6] sm:$0x1]
    %v299 = vlaneseq
    %v300 = vshrl.u32 %v299, 7
    %v301 = vsub.s32 0, %v300
    %v302 = vrot.slane %v297, %v301
    %v320 = vunpack.c.l.b16 %v281
    %v321 = vunpack.c.l.b16 %v282
    %v322 = vunpack.c.l.b16 %v283
    %v323 = vunpack.c.l.b16 %v284
    %v324 = vunpack.c.l.b16 %v285
    %v325 = vunpack.c.l.b16 %v286
    %v326 = vunpack.c.l.b16 %v287
    %v327 = vunpack.c.l.b16 %v288
    %v328 = vunpack.c.l.b16 %v289
    %v329 = vunpack.c.l.b16 %v290
    %v330 = vunpack.c.l.b16 %v291
    %v331 = vunpack.c.l.b16 %v292
    %v332 = vunpack.c.l.b16 %v293
    %v333 = vunpack.c.l.b16 %v294
    %v334 = vunpack.c.l.b16 %v295
    %v335 = vunpack.c.l.b16 %v296
    %v336 = vpack.c.b16 %v321, %v320
    %v337 = vpack.c.b16 %v323, %v322
    %v338 = vpack.c.b16 %v325, %v324
    %v339 = vpack.c.b16 %v327, %v326
    %v340 = vpack.c.b16 %v329, %v328
    %v341 = vpack.c.b16 %v331, %v330
    %v342 = vpack.c.b16 %v333, %v332
    %v343 = vpack.c.b16 %v335, %v334
    %352 = vmatprep.subr.bf16.mxu0 0
    %353 = vmatpush1.bf16.msra.mxu0 %v336
    %354 = vmatprep.subr.bf16.mxu0 0
    %355 = vmatpush1.bf16.msra.mxu0 %v337
    %356 = vmatprep.subr.bf16.mxu0 0
    %357 = vmatpush1.bf16.msra.mxu0 %v338
    %358 = vmatprep.subr.bf16.mxu0 0
    %359 = vmatpush1.bf16.msra.mxu0 %v339
    %360 = vmatprep.subr.bf16.mxu0 0
    %361 = vmatpush1.bf16.msra.mxu0 %v340
    %362 = vmatprep.subr.bf16.mxu0 0
    %363 = vmatpush1.bf16.msra.mxu0 %v341
    %364 = vmatprep.subr.bf16.mxu0 0
    %365 = vmatpush1.bf16.msra.mxu0 %v342
    %366 = vmatprep.subr.bf16.mxu0 0
    %367 = vmatpush1.bf16.msra.mxu0 %v343
    %368 = vmatprep.subr.bf16.mxu0 0
    %369 = vmatpush1.bf16.msra.mxu0 0
    %370 = vmatprep.subr.bf16.mxu0 0
    %371 = vmatpush1.bf16.msra.mxu0 0
    %372 = vmatprep.subr.bf16.mxu0 0
    %373 = vmatpush1.bf16.msra.mxu0 0
    %374 = vmatprep.subr.bf16.mxu0 0
    %375 = vmatpush1.bf16.msra.mxu0 0
    %376 = vmatprep.subr.bf16.mxu0 0
    %377 = vmatpush1.bf16.msra.mxu0 0
    %378 = vmatprep.subr.bf16.mxu0 0
    %379 = vmatpush1.bf16.msra.mxu0 0
    %380 = vmatprep.subr.bf16.mxu0 0
    %381 = vmatpush1.bf16.msra.mxu0 0
    %382 = vmatprep.subr.bf16.mxu0 0
    %383 = vmatpush1.bf16.msra.mxu0 0
    %384 = vmatprep.mubr.bf16.mxu0 0
    %385 = vmatmul.mubr.bf16.gmra.mrb[0].mxu0 %v280
    %v386 = vpop.f32.mrb[0].mxu0
    %v387 = vadd.f32 %v302, %v386
    %v388 = vpop.f32.mrb[0].mxu0
    %v389 = vpop.f32.mrb[0].mxu0
    %v390 = vpop.f32.mrb[0].mxu0
    %391 = vdwg.mxu0
    %v392 = vmax.f32 %v387, 0.0
    %v393 = vpack.c.bf16 %v392, %v392
    %v394 = vld [vmem:[#allocation10] sm:$0xf]
    %v395 = vld [vmem:[#allocation10 + $0x4] sm:$0xf]
    %v396 = vld [vmem:[#allocation10 + $0x8] sm:$0xf]
    %v397 = vld [vmem:[#allocation10 + $0xc] sm:$0xf]
    %v398 = vld [vmem:[#allocation10 + $0x10] sm:$0xf]
    %v399 = vld [vmem:[#allocation10 + $0x14] sm:$0xf]
    %v400 = vld [vmem:[#allocation10 + $0x18] sm:$0xf]
    %v401 = vld [vmem:[#allocation10 + $0x1c] sm:$0xf]
    %v402 = vld [vmem:[#allocation10 + $0x20] sm:$0xf]
    %v403 = vld [vmem:[#allocation10 + $0x24] sm:$0xf]
    %v404 = vld [vmem:[#allocation10 + $0x28] sm:$0xf]
    %v405 = vld [vmem:[#allocation10 + $0x2c] sm:$0xf]
    %v406 = vld [vmem:[#allocation10 + $0x30] sm:$0xf]
    %v407 = vld [vmem:[#allocation10 + $0x34] sm:$0xf]
    %v408 = vld [vmem:[#allocation10 + $0x38] sm:$0xf]
    %v409 = vld [vmem:[#allocation10 + $0x3c] sm:$0xf]
    %v426 = vunpack.c.l.b16 %v394
    %v427 = vunpack.c.l.b16 %v395
    %v428 = vunpack.c.l.b16 %v396
    %v429 = vunpack.c.l.b16 %v397
    %v430 = vunpack.c.l.b16 %v398
    %v431 = vunpack.c.l.b16 %v399
    %v432 = vunpack.c.l.b16 %v400
    %v433 = vunpack.c.l.b16 %v401
    %v434 = vunpack.c.l.b16 %v402
    %v435 = vunpack.c.l.b16 %v403
    %v436 = vunpack.c.l.b16 %v404
    %v437 = vunpack.c.l.b16 %v405
    %v438 = vunpack.c.l.b16 %v406
    %v439 = vunpack.c.l.b16 %v407
    %v440 = vunpack.c.l.b16 %v408
    %v441 = vunpack.c.l.b16 %v409
    %v442 = vpack.c.b16 %v427, %v426
    %v443 = vpack.c.b16 %v429, %v428
    %v444 = vpack.c.b16 %v431, %v430
    %v445 = vpack.c.b16 %v433, %v432
    %v446 = vpack.c.b16 %v435, %v434
    %v447 = vpack.c.b16 %v437, %v436
    %v448 = vpack.c.b16 %v439, %v438
    %v449 = vpack.c.b16 %v441, %v440
    %458 = vmatprep.subr.bf16.mxu0 0
    %459 = vmatpush1.bf16.msra.mxu0 %v442
    %460 = vmatprep.subr.bf16.mxu0 0
    %461 = vmatpush1.bf16.msra.mxu0 %v443
    %462 = vmatprep.subr.bf16.mxu0 0
    %463 = vmatpush1.bf16.msra.mxu0 %v444
    %464 = vmatprep.subr.bf16.mxu0 0
    %465 = vmatpush1.bf16.msra.mxu0 %v445
    %466 = vmatprep.subr.bf16.mxu0 0
    %467 = vmatpush1.bf16.msra.mxu0 %v446
    %468 = vmatprep.subr.bf16.mxu0 0
    %469 = vmatpush1.bf16.msra.mxu0 %v447
    %470 = vmatprep.subr.bf16.mxu0 0
    %471 = vmatpush1.bf16.msra.mxu0 %v448
    %472 = vmatprep.subr.bf16.mxu0 0
    %473 = vmatpush1.bf16.msra.mxu0 %v449
    %474 = vmatprep.subr.bf16.mxu0 0
    %475 = vmatpush1.bf16.msra.mxu0 0
    %476 = vmatprep.subr.bf16.mxu0 0
    %477 = vmatpush1.bf16.msra.mxu0 0
    %478 = vmatprep.subr.bf16.mxu0 0
    %479 = vmatpush1.bf16.msra.mxu0 0
    %480 = vmatprep.subr.bf16.mxu0 0
    %481 = vmatpush1.bf16.msra.mxu0 0
    %482 = vmatprep.subr.bf16.mxu0 0
    %483 = vmatpush1.bf16.msra.mxu0 0
    %484 = vmatprep.subr.bf16.mxu0 0
    %485 = vmatpush1.bf16.msra.mxu0 0
    %486 = vmatprep.subr.bf16.mxu0 0
    %487 = vmatpush1.bf16.msra.mxu0 0
    %488 = vmatprep.subr.bf16.mxu0 0
    %489 = vmatpush1.bf16.msra.mxu0 0
    %490 = vmatprep.mubr.bf16.mxu0 0
    %491 = vmatmul.mubr.bf16.gmra.mrb[0].mxu0 %v393
    %v492 = vpop.f32.mrb[0].mxu0
    %v493 = vadd.f32 0.0, %v492
    %v494 = vpop.f32.mrb[0].mxu0
    %v495 = vpop.f32.mrb[0].mxu0
    %v496 = vpop.f32.mrb[0].mxu0
    %497 = vdwg.mxu0
    %498 = vst [vmem:[#allocation11] sm:$0xff] %v493
    // Predicated region
    $region54: #{linear_relu_encoder.1} parent=1 // pred_check
      _
    $region55: #{linear_relu_encoder.1} parent=1 // pred_check_branch
      %500 = sbr.rel (0) target = $region57
    $region56: #{linear_relu_encoder.1} parent=1 // pred_region
      %s502 = ssub.s32 128, 128
      %503 = vsyncadd [#allocation4], %s502
      %s505 = sshll.u32 [#allocation11], 4
      %s506 = int_to_ptr.vmem [resolvable:$true] %s505
      %508 = dma.vmem_to_hbm [thread:$0]  %s506, 128, %s8, [#allocation4]
    $region57: #{linear_relu_encoder.1} parent=1 // pred_fallthru
      _
    // Predicated region
    $region58: #{linear_relu_encoder.1} parent=1 // pred_check
      _
    $region59: #{linear_relu_encoder.1} parent=1 // pred_check_branch
      %510 = sbr.rel (0) target = $region61
    $region60: #{linear_relu_encoder.1} parent=1 // pred_region
      %511 = dma.done [#allocation4], 128
    $region61: #{linear_relu_encoder.1} parent=1 // pred_fallthru
      _
    %512 = vsyncpa [#allocation3], 1
    %513 = vsyncpa [#allocation6], 1
    %514 = vsyncpa [#allocation9], 1
    %515 = vsyncpa [#allocation4], 1

</llo_original>
